<compile_context>
chip_gen: v7x
topology: tpu7x:2x2x1
jax: 0.10.0
libtpu: 0.0.40
codegen_flags: <defaults>
</compile_context>

<pallas_src>
import math

import jax
import jax.numpy as jnp
from jax.experimental import pallas as pl
from jax.experimental.pallas import tpu as pltpu


# --------------------------------------------------------------------------
# Kernel body: out = x * scale + shift   (scale/shift precomputed per channel)
# --------------------------------------------------------------------------
def _laychnorm_byol_kernel(x_ref, ss_ref, o_ref):
    # x_ref: (TR, TC); ss_ref: (2, TC) f32 -> row 0 = scale, row 1 = shift.
    scale = ss_ref[0:1, :]                              # (1, TC)
    shift = ss_ref[1:2, :]                              # (1, TC)
    x = x_ref[...].astype(jnp.float32)                  # (TR, TC)
    o_ref[...] = (x * scale + shift).astype(o_ref.dtype)


# --------------------------------------------------------------------------
# Tiling helpers
# --------------------------------------------------------------------------
def _lane_pack_factor(rows, cols):
    """Pack k rows into one so the packed lane dim k*cols is a multiple of 128."""
    if cols % 128 == 0 or rows <= 1:
        return 1
    k = 128 // math.gcd(cols, 128)
    if k <= 1 or rows % k != 0:
        return 1
    # Grow further (still dividing rows) toward a few-hundred-lane packed row.
    while rows % (2 * k) == 0 and 2 * k * cols <= 2048:
        k *= 2
    return k


def _auto_tiles(rows, cols, itemsize, tile_rows, vmem_limit_bytes):
    """Pick (tile_rows, tile_cols, vmem_limit) from the scoped-VMEM budget."""
    try:
        info = pltpu.get_tpu_info()
        vmem_cap = int(getattr(info, "vmem_capacity_bytes", 64 * 1024 * 1024))
    except Exception:  # pragma: no cover - CPU interpret / old jax
        vmem_cap = 64 * 1024 * 1024  # v7x-conservative fallback
    hard_cap = (vmem_cap * 7) // 8   # never request more than ~7/8 of physical

    if vmem_limit_bytes is None:
        vmem_limit = min(28 * 1024 * 1024, hard_cap)
    else:
        vmem_limit = min(int(vmem_limit_bytes), hard_cap)

    # ~4 live data tiles per step (double-buffered input + output); leave
    # headroom for the (2, C) scale/shift buffers and compiler scratch.
    tile_bytes = max(512 * 1024, (vmem_limit - 4 * 1024 * 1024) // 4)

    # Column tiling only for extremely wide channel counts where even an
    # 8-row full-width slab would blow one tile budget.
    if cols > 128 and 8 * cols * itemsize > tile_bytes:
        tile_cols = max(128, ((tile_bytes // (8 * itemsize)) // 128) * 128)
    else:
        tile_cols = cols

    if tile_rows is None:
        tr = tile_bytes // max(1, tile_cols * itemsize)
        tr = max(8, min(8192, (tr // 8) * 8))
        # Keep >= ~8 row blocks so the 'parallel' grid axis feeds both v7x TCs.
        occ_cap = max(8, ((-(-rows // 8) + 7) // 8) * 8)  # round_up(cdiv(rows,8), 8)
        tr = min(tr, occ_cap)
    else:
        tr = max(8, (int(tile_rows) // 8) * 8)
        needed = 4 * tr * tile_cols * itemsize + 4 * 1024 * 1024
        vmem_limit = min(max(vmem_limit, needed), hard_cap)

    if tr >= rows:
        tr = rows  # full-extent block is always layout-legal
    return tr, tile_cols, vmem_limit


# --------------------------------------------------------------------------
# Public wrapper
# --------------------------------------------------------------------------
def laychnorm_byol(x, running_mean, running_var, eps=1e-5, *,
                   tile_rows=None, vmem_limit_bytes=None, force_pallas=False):
    """out = (x - running_mean) / sqrt(running_var + eps), broadcast over last axis.

    x: (..., C);  running_mean, running_var: (C,).
    """
    orig_shape = x.shape
    C = int(orig_shape[-1])
    x2 = x.reshape(-1, C)
    R = int(x2.shape[0])
    itemsize = x2.dtype.itemsize

    # Per-channel affine precomputed once (exact rsqrt via 1/sqrt; O(C) XLA op).
    scale = 1.0 / jnp.sqrt(running_var.astype(jnp.float32) + jnp.float32(eps))
    shift = -running_mean.astype(jnp.float32) * scale

    # Tiny inputs: pallas_call launch overhead dominates -> let XLA fuse it.
    if not force_pallas and R * C * itemsize < (1 << 20):
        out = (x2.astype(jnp.float32) * scale[None, :]
               + shift[None, :]).astype(x.dtype)
        return out.reshape(orig_shape)

    # Lane packing: make the stored last dim a multiple of 128 when possible.
    k = _lane_pack_factor(R, C)
    Rp, Cp = R // k, C * k
    xp = x2.reshape(Rp, Cp)
    ss = jnp.stack([scale, shift], axis=0)          # (2, C) f32
    if k > 1:
        ss = jnp.tile(ss, (1, k))                   # (2, Cp)

    tr, tc, vmem_limit = _auto_tiles(Rp, Cp, itemsize, tile_rows, vmem_limit_bytes)
    grid = (pl.cdiv(Rp, tr), pl.cdiv(Cp, tc))

    out = pl.pallas_call(
        _laychnorm_byol_kernel,
        out_shape=jax.ShapeDtypeStruct((Rp, Cp), x.dtype),
        grid_spec=pltpu.PrefetchScalarGridSpec(
            num_scalar_prefetch=0,
            grid=grid,
            in_specs=[
                pl.BlockSpec((tr, tc), lambda i, j: (i, j)),
                pl.BlockSpec((2, tc), lambda i, j: (0, j)),
            ],
            out_specs=pl.BlockSpec((tr, tc), lambda i, j: (i, j)),
        ),
        compiler_params=pltpu.CompilerParams(
            dimension_semantics=("parallel", "parallel"),
            vmem_limit_bytes=vmem_limit,
        ),
    )(xp, ss)

    return out.reshape(orig_shape)


def _reference(x, running_mean, running_var, eps=1e-5):
    std = jnp.sqrt(running_var.astype(jnp.float32) + jnp.float32(eps))
    out = (x.astype(jnp.float32) - running_mean.astype(jnp.float32)) / std
    return out.astype(x.dtype)


if __name__ == "__main__":
    key = jax.random.PRNGKey(0)
    k1, k2, k3, k4, k5 = jax.random.split(key, 5)
    eps = 1e-5

    # Case 1: BYOL-projector-style activations (batch, channels), lane-dense C.
    B, C = 16, 256
    x = jax.random.normal(k1, (B, C), dtype=jnp.float32)
    running_mean = 0.1 * jax.random.normal(k2, (C,), dtype=jnp.float32)
    running_var = jax.random.uniform(k3, (C,), dtype=jnp.float32,
                                     minval=0.5, maxval=1.5)
    out = jax.block_until_ready(
        laychnorm_byol(x, running_mean, running_var, eps=eps, force_pallas=True))
    ref = _reference(x, running_mean, running_var, eps=eps)
    assert out.shape == x.shape
    assert jnp.allclose(out, ref, atol=2e-5, rtol=2e-5), "case 1 mismatch"

    # Case 2: channel count not a multiple of 128 -> lane-packing path.
    B2, C2 = 64, 20
    x_b = jax.random.normal(k4, (B2, C2), dtype=jnp.float32)
    mean_b = 0.1 * jax.random.normal(k5, (C2,), dtype=jnp.float32)
    var_b = jax.random.uniform(k1, (C2,), dtype=jnp.float32,
                               minval=0.5, maxval=1.5)
    out_b = jax.block_until_ready(
        laychnorm_byol(x_b, mean_b, var_b, eps=eps, force_pallas=True))
    ref_b = _reference(x_b, mean_b, var_b, eps=eps)
    assert out_b.shape == x_b.shape
    assert jnp.allclose(out_b, ref_b, atol=2e-5, rtol=2e-5), "case 2 mismatch"

    # Case 3: tiny-input auto path (fused XLA, no pallas_call).
    out_c = jax.block_until_ready(
        laychnorm_byol(x, running_mean, running_var, eps=eps))
    assert jnp.allclose(out_c, ref, atol=2e-5, rtol=2e-5), "case 3 mismatch"

    print("KERNEL_OK")
</pallas_src>

<mosaic_0001>
module attributes {stable_mosaic.version = 11 : i64} {
  func.func @_laychnorm_byol_kernel(%arg0: i32, %arg1: i32, %arg2: memref<8x256xf32, #tpu.memory_space<vmem>>, %arg3: memref<2x256xf32, #tpu.memory_space<vmem>>, %arg4: memref<8x256xf32, #tpu.memory_space<vmem>>) attributes {dimension_semantics = [#tpu.dimension_semantics<parallel>, #tpu.dimension_semantics<parallel>], iteration_bounds = array<i64: 2, 1>, scalar_prefetch = 0 : i64, scratch_operands = 0 : i64, tpu.core_type = #tpu.core_type<tc>, window_params = [{transform_indices = @transform_0, window_bounds = array<i64: 8, 256>}, {transform_indices = @transform_1, window_bounds = array<i64: 2, 256>}, {transform_indices = @transform_2, window_bounds = array<i64: 8, 256>}]} {
    %c0 = arith.constant 0 : index
    %c0_0 = arith.constant 0 : index
    %0 = vector.load %arg3[%c0, %c0_0] : memref<2x256xf32, #tpu.memory_space<vmem>>, vector<1x256xf32>
    %c1 = arith.constant 1 : index
    %c0_1 = arith.constant 0 : index
    %1 = vector.load %arg3[%c1, %c0_1] : memref<2x256xf32, #tpu.memory_space<vmem>>, vector<1x256xf32>
    %c0_2 = arith.constant 0 : index
    %c0_3 = arith.constant 0 : index
    %2 = vector.load %arg2[%c0_2, %c0_3] : memref<8x256xf32, #tpu.memory_space<vmem>>, vector<8x256xf32>
    %3 = vector.broadcast %0 : vector<1x256xf32> to vector<8x256xf32>
    %4 = arith.mulf %2, %3 : vector<8x256xf32>
    %5 = vector.broadcast %1 : vector<1x256xf32> to vector<8x256xf32>
    %6 = arith.addf %4, %5 : vector<8x256xf32>
    %c0_4 = arith.constant 0 : index
    %c0_5 = arith.constant 0 : index
    %7 = vector.load %arg4[%c0_4, %c0_5] : memref<8x256xf32, #tpu.memory_space<vmem>>, vector<8x256xf32>
    tpu.vector_store %arg4[%c0_4, %c0_5], %6 {strides = array<i32>} : memref<8x256xf32, #tpu.memory_space<vmem>>, vector<8x256xf32>,
    return
  }
  func.func @transform_0(%arg0: i32, %arg1: i32) -> (i32, i32) {
    %c0_i32 = arith.constant 0 : i32
    return %arg0, %arg1 : i32, i32
  }
  func.func @transform_1(%arg0: i32, %arg1: i32) -> (i32, i32) {
    %c0_i32 = arith.constant 0 : i32
    %c0_i32_0 = arith.constant 0 : i32
    return %c0_i32, %arg1 : i32, i32
  }
  func.func @transform_2(%arg0: i32, %arg1: i32) -> (i32, i32) {
    %c0_i32 = arith.constant 0 : i32
    return %arg0, %arg1 : i32, i32
  }
}

</mosaic_0001>

<llo_original>
// kernel: tpu_custom_call.1
$region0: #{tpu_custom_call.1}
  #allocation0 [shape = 'u32[]', space=smem, size = 0x4, offset = 0x4, fixed_abs, tag = 'smem constant byte address 0x4 - core index']
  #allocation1 [shape = 'u32[144,128]{1,0:T(1,128)}', space=vmem, size = 0x12000, scoped, tag = 'internal scratch']
  %s0 = inlined_call_operand.hbm [shape: f32[16,256], index: 0, kind: input, shape index: {}]
  %s1 = inlined_call_operand.hbm [shape: f32[2,256], index: 1, kind: input, shape index: {}]
  %s2 = inlined_call_operand.hbm [shape: f32[16,256], index: 2, kind: output, shape index: {}]
  %s3 = sld [smem:[#allocation0]]
  $region49: #{tpu_custom_call.1} parent=0
    _
  %s5 = ssub.s32 1, %s3
  %s6 = scalar_select 0, %s5, %s3
  $region1: #{tpu_custom_call.1} parent=0
    #allocation2 [shape = 'u8[16384]{0}', space=vmem, size = 0x4000, scoped, tag = 'input window, operand 0']
    #allocation3 [shape = 's32[2]{0}', space=sflag, size = 0x8, scoped, tag = 'scoped memory for tpu_custom_call.1']
    #allocation4 [shape = 's32[2]{0}', space=sflag, size = 0x8, scoped, tag = 'scoped memory for tpu_custom_call.1']
    #allocation5 [shape = 'u8[2048]{0}', space=vmem, size = 0x800, scoped, tag = 'input window, operand 1, single buffered']
    #allocation6 [shape = 's32[1]{0}', space=sflag, size = 0x4, scoped, tag = 'scoped memory for tpu_custom_call.1']
    #allocation7 [shape = 'u8[16384]{0}', space=vmem, size = 0x4000, scoped, tag = 'output window, operand 0']
    %7 = vsyncpa [#allocation3], 0
    %s8 = scalar_lea.sflag [#allocation3], 1
    %9 = vsyncpa %s8, 0
    %10 = vsyncpa [#allocation6], 0
    %11 = vsyncpa [#allocation4], 0
    %s12 = scalar_lea.sflag [#allocation4], 1
    %13 = vsyncpa %s12, 0
    loop: start=0, step=1, limit=4
    $region2: #{tpu_custom_call.1} parent=1 // loop_pre_header
      _
    $region3: #{tpu_custom_call.1} parent=1 // loop_header
      %s15 = sphi 0, %s19
      %p16 = scmp.ge.s32.totalorder %s15, 4
      %s22 = sphi 0, %s34
      %s23 = sphi 0, %s30
      %s24 = sphi 0, %s22
      %s25 = sphi 0, %s23
      %s26 = sphi 0, %s24
      %s27 = sphi 0, %s25
      %s39 = sphi 0, %s41
      %s42 = sphi 0, %s39
      %s43 = sphi 0, %s42
      %s59 = sphi 0, %s43
      %s65 = sphi 0, %s67
      %s68 = sphi 0, %s65
      %s69 = sphi 0, %s68
      %s85 = sphi 0, %s69
      %s93 = sphi 0, %s95
      %s96 = sphi 0, %s93
      %s97 = sphi 0, %s96
      %s113 = sphi 0, %s97
    $region4: #{tpu_custom_call.1} parent=1 // loop_header_branch
      %18 = sbr.rel (%p16) target = $region8
    $region5: #{tpu_custom_call.1} parent=1 // loop_body
      %s20 = ssub.s32 %s15, 1
      %s21 = ssub.s32 %s15, 2
      %s28 = sadd.s32 1, %s23
      %p29 = scmp.ge.s32.totalorder %s28, 1
      %s30 = scalar_select %p29, 0, %s28
      %s31 = sadd.s32 1, %s22
      %s32 = scalar_select %p29, %s31, %s22
      %p33 = scmp.ge.s32.totalorder %s32, 2
      %s34 = scalar_select %p33, 0, %s32
      %s35 = ssub.s32 %s22, %s34
      %s36 = ssub.s32 %s23, %s30
      %s37 = sor.u32 %s35, %s36
      %p38 = scmp.eq.s32.totalorder %s37, 0
      %s40 = sadd.s32 %s39, 1
      %s41 = scalar_select %p38, %s39, %s40
      %p44 = pneg %p38
      %p45 = scmp.eq.s32.totalorder %s15, 1
      %p46 = por %p44, %p45
      %p47 = scmp.ne.s32.totalorder %s39, %s42
      %p48 = scmp.eq.s32.totalorder %s15, 0
      %p49 = por %p47, %p48
      %p50 = scmp.ne.s32.totalorder %s39, %s42
      %p51 = scmp.eq.s32.totalorder %s20, 1
      %p52 = por %p50, %p51
      %p53 = scmp.ne.s32.totalorder %s42, %s43
      %p54 = scmp.eq.s32.totalorder %s20, 0
      %p55 = por %p53, %p54
      %p56 = scmp.ne.s32.totalorder %s42, %s43
      %p57 = scmp.eq.s32.totalorder %s21, 1
      %p58 = por %p56, %p57
      %p60 = scmp.ne.s32.totalorder %s43, %s59
      %p61 = scmp.eq.s32.totalorder %s21, 0
      %p62 = por %p60, %p61
      %s63 = ssub.s32 %s23, %s30
      %p64 = scmp.eq.s32.totalorder %s63, 0
      %s66 = sadd.s32 %s65, 1
      %s67 = scalar_select %p64, %s65, %s66
      %p70 = pneg %p64
      %p71 = scmp.eq.s32.totalorder %s15, 1
      %p72 = por %p70, %p71
      %p73 = scmp.ne.s32.totalorder %s65, %s68
      %p74 = scmp.eq.s32.totalorder %s15, 0
      %p75 = por %p73, %p74
      %p76 = scmp.ne.s32.totalorder %s65, %s68
      %p77 = scmp.eq.s32.totalorder %s20, 1
      %p78 = por %p76, %p77
      %p79 = scmp.ne.s32.totalorder %s68, %s69
      %p80 = scmp.eq.s32.totalorder %s20, 0
      %p81 = por %p79, %p80
      %p82 = scmp.ne.s32.totalorder %s68, %s69
      %p83 = scmp.eq.s32.totalorder %s21, 1
      %p84 = por %p82, %p83
      %p86 = scmp.ne.s32.totalorder %s69, %s85
      %p87 = scmp.eq.s32.totalorder %s21, 0
      %p88 = por %p86, %p87
      %s89 = ssub.s32 %s22, %s34
      %s90 = ssub.s32 %s23, %s30
      %s91 = sor.u32 %s89, %s90
      %p92 = scmp.eq.s32.totalorder %s91, 0
      %s94 = sadd.s32 %s93, 1
      %s95 = scalar_select %p92, %s93, %s94
      %p98 = pneg %p92
      %p99 = scmp.eq.s32.totalorder %s15, 1
      %p100 = por %p98, %p99
      %p101 = scmp.ne.s32.totalorder %s93, %s96
      %p102 = scmp.eq.s32.totalorder %s15, 0
      %p103 = por %p101, %p102
      %p104 = scmp.ne.s32.totalorder %s93, %s96
      %p105 = scmp.eq.s32.totalorder %s20, 1
      %p106 = por %p104, %p105
      %p107 = scmp.ne.s32.totalorder %s96, %s97
      %p108 = scmp.eq.s32.totalorder %s20, 0
      %p109 = por %p107, %p108
      %p110 = scmp.ne.s32.totalorder %s96, %s97
      %p111 = scmp.eq.s32.totalorder %s21, 1
      %p112 = por %p110, %p111
      %p114 = scmp.ne.s32.totalorder %s97, %s113
      %p115 = scmp.eq.s32.totalorder %s21, 0
      %p116 = por %p114, %p115
      %p117 = scmp.le.s32.totalorder 1, %s15
      %p118 = scmp.lt.s32.totalorder %s15, 3
      %p119 = pnand %p117, %p118
      %p120 = pneg %p119
      // Predicated region
      $region9: #{tpu_custom_call.1} parent=5 // pred_check
        _
      $region10: #{tpu_custom_call.1} parent=5 // pred_check_branch
        %122 = sbr.rel (%p119) target = $region12
      $region11: #{tpu_custom_call.1} parent=5 // pred_region
        %s123 = ssub.s32 %s15, 1
        // Predicated region
        $region13: #{tpu_custom_call.1} parent=11 // pred_check
          %p124 = pneg %p81
        $region14: #{tpu_custom_call.1} parent=11 // pred_check_branch
          %126 = sbr.rel (%p124) target = $region16
        $region15: #{tpu_custom_call.1} parent=11 // pred_region
          %s127 = smul.u32 2, %s25
          %s129 = ssub.s32 64, 64
          %130 = vsyncadd [#allocation6], %s129
          %s131 = smul.addr %s127, 32
          %s132 = scalar_lea.hbm %s1, %s131
          %s134 = sshll.u32 [#allocation5], 4
          %s135 = int_to_ptr.vmem [resolvable:$true] %s134
          %137 = dma.hbm_to_vmem [thread:$0]  %s132, 64, %s135, [#allocation6]
        $region16: #{tpu_custom_call.1} parent=11 // pred_fallthru
          _
      $region12: #{tpu_custom_call.1} parent=5 // pred_fallthru
        _
      %p138 = scmp.lt.s32.totalorder %s15, 2
      // Predicated region
      $region17: #{tpu_custom_call.1} parent=5 // pred_check
        %p139 = pneg %p138
      $region18: #{tpu_custom_call.1} parent=5 // pred_check_branch
        %141 = sbr.rel (%p139) target = $region20
      $region19: #{tpu_custom_call.1} parent=5 // pred_region
        // Predicated region
        $region21: #{tpu_custom_call.1} parent=19 // pred_check
          %p142 = pneg %p49
        $region22: #{tpu_custom_call.1} parent=19 // pred_check_branch
          %144 = sbr.rel (%p142) target = $region24
        $region23: #{tpu_custom_call.1} parent=19 // pred_region
          %s145 = sand.u32 %s39, 1
          %s146 = scalar_lea.sflag [#allocation3], %s145
          %s147 = sand.u32 %s39, 1
          %s148 = smul.addr %s147, 16
          %s149 = scalar_lea.vmem [#allocation2], %s148
          %s150 = smul.u32 2, %s23
          %s152 = ssub.s32 256, 256
          %153 = vsyncadd %s146, %s152
          %s154 = smul.addr %s22, 2
          %s155 = sadd.s32 %s150, %s154
          %s156 = smul.addr %s155, 128
          %s157 = scalar_lea.hbm %s0, %s156
          %s159 = sshll.u32 %s149, 4
          %s160 = int_to_ptr.vmem [resolvable:$true] %s159
          %162 = dma.hbm_to_vmem [thread:$0]  %s157, 256, %s160, %s146
        $region24: #{tpu_custom_call.1} parent=19 // pred_fallthru
          _
      $region20: #{tpu_custom_call.1} parent=5 // pred_fallthru
        _
      %p163 = scmp.le.s32.totalorder 1, %s15
      %p164 = scmp.lt.s32.totalorder %s15, 3
      %p165 = pnand %p163, %p164
      %p166 = pneg %p165
      // Predicated region
      $region25: #{tpu_custom_call.1} parent=5 // pred_check
        _
      $region26: #{tpu_custom_call.1} parent=5 // pred_check_branch
        %168 = sbr.rel (%p165) target = $region28
      $region27: #{tpu_custom_call.1} parent=5 // pred_region
        %s169 = ssub.s32 %s15, 1
        %s170 = sand.u32 %s42, 1
        %s171 = scalar_lea.sflag [#allocation3], %s170
        %s172 = sand.u32 %s42, 1
        %s173 = smul.addr %s172, 16
        %s174 = scalar_lea.vmem [#allocation2], %s173
        // Predicated region
        $region29: #{tpu_custom_call.1} parent=27 // pred_check
          %p175 = pneg %p55
        $region30: #{tpu_custom_call.1} parent=27 // pred_check_branch
          %177 = sbr.rel (%p175) target = $region32
        $region31: #{tpu_custom_call.1} parent=27 // pred_region
          %178 = dma.done %s171, 256
        $region32: #{tpu_custom_call.1} parent=27 // pred_fallthru
          _
        // Predicated region
        $region33: #{tpu_custom_call.1} parent=27 // pred_check
          %p179 = pneg %p81
        $region34: #{tpu_custom_call.1} parent=27 // pred_check_branch
          %181 = sbr.rel (%p179) target = $region36
        $region35: #{tpu_custom_call.1} parent=27 // pred_region
          %182 = dma.done [#allocation6], 64
        $region36: #{tpu_custom_call.1} parent=27 // pred_fallthru
          _
        %s183 = sand.u32 %s42, 1
        %s184 = scalar_lea.sflag [#allocation3], %s183
        %s185 = sand.u32 %s42, 1
        %s186 = smul.addr %s185, 16
        %s187 = scalar_lea.vmem [#allocation2], %s186
        %p188 = pneg %p55
        %p189 = pneg %p52
        %p190 = pneg %p81
        %p191 = pneg %p78
        %p192 = pneg %p109
        %p193 = pneg %p106
        %s194 = sand.u32 %s96, 1
        %s195 = scalar_lea.sflag [#allocation4], %s194
        %s196 = sand.u32 %s96, 1
        %s197 = smul.addr %s196, 16
        %s198 = scalar_lea.vmem [#allocation7], %s197
        %s199 = smul.u32 2, %s25
        %s200 = smul.u32 2, %s25
        %s201 = smul.u32 2, %s25
        %v202 = vld [vmem:[#allocation5] ss:$2 sm:$0x3]
        %s203 = scalar_lea.vmem [#allocation5], 1
        %v204 = vld [vmem:[%s203] ss:$2 sm:$0x3]
        %v205 = vld [vmem:[%s174] sm:$0xff]
        %v206 = vld [vmem:[%s174 + $0x8] sm:$0xff]
        %v208 = vlaneseq
        %v209 = vshrl.u32 %v208, 7
        %v210 = vsub.s32 0, %v209
        %v211 = vrot.slane %v202, %v210
        %v212 = vlaneseq
        %v213 = vshrl.u32 %v212, 7
        %v214 = vsub.s32 1, %v213
        %v215 = vrot.slane %v202, %v214
        %v218 = vmul.f32 %v205, %v211
        %v219 = vmul.f32 %v206, %v215
        %v221 = vlaneseq
        %v222 = vshrl.u32 %v221, 7
        %v223 = vsub.s32 0, %v222
        %v224 = vrot.slane %v204, %v223
        %v225 = vlaneseq
        %v226 = vshrl.u32 %v225, 7
        %v227 = vsub.s32 1, %v226
        %v228 = vrot.slane %v204, %v227
        %v231 = vadd.f32 %v218, %v224
        %v232 = vadd.f32 %v219, %v228
        %233 = vst [vmem:[%s198] sm:$0xff] %v231
        %234 = vst [vmem:[%s198 + $0x8] sm:$0xff] %v232
        %s235 = sand.u32 %s96, 1
        %s236 = scalar_lea.sflag [#allocation4], %s235
        %s237 = sand.u32 %s96, 1
        %s238 = smul.addr %s237, 16
        %s239 = scalar_lea.vmem [#allocation7], %s238
        // Predicated region
        $region37: #{tpu_custom_call.1} parent=27 // pred_check
          %p240 = pneg %p106
        $region38: #{tpu_custom_call.1} parent=27 // pred_check_branch
          %242 = sbr.rel (%p240) target = $region40
        $region39: #{tpu_custom_call.1} parent=27 // pred_region
          %s243 = smul.u32 2, %s25
          %s245 = ssub.s32 256, 256
          %246 = vsyncadd %s236, %s245
          %s247 = smul.addr %s24, 2
          %s248 = sadd.s32 %s243, %s247
          %s249 = smul.addr %s248, 128
          %s250 = scalar_lea.hbm %s2, %s249
          %s252 = sshll.u32 %s239, 4
          %s253 = int_to_ptr.vmem [resolvable:$true] %s252
          %255 = dma.vmem_to_hbm [thread:$0]  %s253, 256, %s250, %s236
        $region40: #{tpu_custom_call.1} parent=27 // pred_fallthru
          _
      $region28: #{tpu_custom_call.1} parent=5 // pred_fallthru
        _
      %p256 = scmp.le.s32.totalorder 2, %s15
      // Predicated region
      $region41: #{tpu_custom_call.1} parent=5 // pred_check
        %p257 = pneg %p256
      $region42: #{tpu_custom_call.1} parent=5 // pred_check_branch
        %259 = sbr.rel (%p257) target = $region44
      $region43: #{tpu_custom_call.1} parent=5 // pred_region
        %s260 = ssub.s32 %s15, 2
        // Predicated region
        $region45: #{tpu_custom_call.1} parent=43 // pred_check
          %p261 = pneg %p112
        $region46: #{tpu_custom_call.1} parent=43 // pred_check_branch
          %263 = sbr.rel (%p261) target = $region48
        $region47: #{tpu_custom_call.1} parent=43 // pred_region
          %s264 = sand.u32 %s97, 1
          %s265 = scalar_lea.sflag [#allocation4], %s264
          %s266 = sand.u32 %s97, 1
          %s267 = smul.addr %s266, 16
          %s268 = scalar_lea.vmem [#allocation7], %s267
          %269 = dma.done %s265, 256
        $region48: #{tpu_custom_call.1} parent=43 // pred_fallthru
          _
      $region44: #{tpu_custom_call.1} parent=5 // pred_fallthru
        _
    $region6: #{tpu_custom_call.1} parent=1 // loop_footer
      %s19 = sadd.s32 1, %s15
    $region7: #{tpu_custom_call.1} parent=1 // loop_footer_branch
      %14 = sbr.rel target = $region3
    $region8: #{tpu_custom_call.1} parent=1 // loop_exit
      _
    %270 = vsyncpa [#allocation3], 1
    %s271 = scalar_lea.sflag [#allocation3], 1
    %272 = vsyncpa %s271, 1
    %273 = vsyncpa [#allocation6], 1
    %274 = vsyncpa [#allocation4], 1
    %s275 = scalar_lea.sflag [#allocation4], 1
    %276 = vsyncpa %s275, 1

</llo_original>
